<compile_context>
chip_gen: v6e
topology: v6e:2x2x1
jax: 0.10.0
libtpu: 0.0.40
codegen_flags: <defaults>
</compile_context>

<pallas_src>
import functools

import jax
import jax.numpy as jnp
from jax import lax
from jax.experimental import pallas as pl
from jax.experimental.pallas import tpu as pltpu


def _cdiv(a, b):
    return -(-a // b)


def _round_up(x, m):
    return ((x + m - 1) // m) * m


def _triplet_loss_kernel(a_ref, p_ref, n_ref, out_ref, *,
                         margin, batch, block_rows, mask_rows):
    a = a_ref[...].astype(jnp.float32)
    p = p_ref[...].astype(jnp.float32)
    n = n_ref[...].astype(jnp.float32)

    # dpos - dneg == sum((n - p) * ((a - p) + (a - n)), axis=1)
    # (difference of squares -> one multiply + ONE row reduction per tile)
    prod = (n - p) * ((a - p) + (a - n))
    diff = jnp.sum(prod, axis=1, keepdims=True)               # (TB, 1)
    hinge = jnp.maximum(diff + jnp.float32(margin), 0.0)      # (TB, 1)

    if mask_rows:
        # Zero out rows of the ragged last block that lie past the true batch.
        row = (pl.program_id(0) * block_rows
               + lax.broadcasted_iota(jnp.int32, hinge.shape, 0))
        hinge = jnp.where(row < batch, hinge, 0.0)

    partial = jnp.sum(hinge)                                   # scalar f32

    # Lane-dense, fully (8,128)-aligned output block: partial sum at [0, 0],
    # zeros elsewhere, so the wrapper can simply jnp.sum() all partials.
    r = lax.broadcasted_iota(jnp.int32, (8, 128), 0)
    c = lax.broadcasted_iota(jnp.int32, (8, 128), 1)
    out_ref[...] = jnp.where((r == 0) & (c == 0), partial, jnp.float32(0.0))


def triplet_loss(anchor, positive, negative, margin, size_average=True):
    """Pallas TPU implementation of TripletLoss.forward.

    anchor, positive, negative: (B, D) float arrays (f32 or bf16).
    Returns a float32 scalar (mean over batch if size_average else sum).
    """
    B, D = anchor.shape
    itemsize = jnp.dtype(anchor.dtype).itemsize
    sublane = {4: 8, 2: 16, 1: 32}.get(itemsize, 8)   # rows per packed sublane tile
    d_pad = _round_up(D, 128)                         # lane-padded compute width

    # --- generation-aware VMEM budget --------------------------------------
    try:
        vmem_cap = int(pltpu.get_tpu_info().vmem_capacity_bytes)
    except Exception:
        vmem_cap = 64 * 1024 * 1024                   # conservative (v7x) fallback
    if vmem_cap <= 0:
        vmem_cap = 64 * 1024 * 1024
    total_budget = int(vmem_cap * 0.70)               # ~45 MiB v7x, ~90 MiB v5e/v6e
    vmem_limit = int(min(vmem_cap * 0.75, 100 * 1024 * 1024))

    # --- tile-row sizing -----------------------------------------------------
    # VMEM per row: 3 inputs x 2 pipeline buffers (input dtype) plus ~5
    # full-width f32 tiles for the upcasts / elementwise intermediates.
    per_row_bytes = 3 * 2 * D * itemsize + 5 * d_pad * 4
    tb_vmem = max(sublane, total_budget // per_row_bytes)
    # ~4 MiB per input block (f32 padded footprint) amortizes per-step overhead.
    tb_target = max(sublane, (4 * 1024 * 1024) // (d_pad * 4))
    tb = min(tb_vmem, tb_target)
    # Guarantee >=2 grid steps so "parallel" shards across v7x's 2 TensorCores.
    tb = min(tb, _round_up(_cdiv(B, 2), sublane))
    tb = max(sublane, (tb // sublane) * sublane)

    num_steps = _cdiv(B, tb)
    mask_rows = (B % tb) != 0

    # --- specs ---------------------------------------------------------------
    block_bytes = tb * D * itemsize
    in_spec = None
    if block_bytes < 512 * 1024 and num_steps >= 2:
        # Small blocks: deepen input pipelining to hide DMA issue latency.
        try:
            in_spec = pl.BlockSpec((tb, D), lambda i: (i, 0),
                                   pipeline_mode=pl.Buffered(3))
        except Exception:
            in_spec = None
    if in_spec is None:
        in_spec = pl.BlockSpec((tb, D), lambda i: (i, 0))

    out_spec = pl.BlockSpec((8, 128), lambda i: (0, i))
    out_shape = jax.ShapeDtypeStruct((8, 128 * num_steps), jnp.float32)

    try:
        cost = pl.CostEstimate(
            flops=6 * B * D,
            transcendentals=0,
            bytes_accessed=3 * B * D * itemsize + 8 * 128 * num_steps * 4,
        )
    except Exception:
        cost = None

    kernel = functools.partial(
        _triplet_loss_kernel,
        margin=float(margin),
        batch=B,
        block_rows=tb,
        mask_rows=mask_rows,
    )

    partials = pl.pallas_call(
        kernel,
        out_shape=out_shape,
        grid=(num_steps,),
        in_specs=[in_spec, in_spec, in_spec],
        out_specs=out_spec,
        compiler_params=pltpu.CompilerParams(
            dimension_semantics=("parallel",),
            vmem_limit_bytes=vmem_limit,
        ),
        cost_estimate=cost,
    )(anchor, positive, negative)

    total = jnp.sum(partials)                          # padded rows wrote 0
    return (total / B) if size_average else total


def triplet_loss_ref(anchor, positive, negative, margin, size_average=True):
    """Pure-JAX reference mirroring the PyTorch module."""
    a = anchor.astype(jnp.float32)
    p = positive.astype(jnp.float32)
    n = negative.astype(jnp.float32)
    dpos = jnp.sum((a - p) ** 2, axis=1)
    dneg = jnp.sum((a - n) ** 2, axis=1)
    losses = jax.nn.relu(dpos - dneg + margin)
    return jnp.mean(losses) if size_average else jnp.sum(losses)


if __name__ == "__main__":
    # TripletLoss.__init__ only stores the (scalar) margin — no learnable params.
    margin = 1.0

    def run_case(key, B, D, dtype):
        ka, kp, kn = jax.random.split(key, 3)
        a = jax.random.normal(ka, (B, D), dtype=jnp.float32).astype(dtype)
        p = jax.random.normal(kp, (B, D), dtype=jnp.float32).astype(dtype)
        n = jax.random.normal(kn, (B, D), dtype=jnp.float32).astype(dtype)
        for size_average in (True, False):
            got = jax.block_until_ready(
                triplet_loss(a, p, n, margin, size_average=size_average))
            want = triplet_loss_ref(a, p, n, margin, size_average=size_average)
            assert jnp.allclose(got, want, rtol=1e-4, atol=1e-3), (
                B, D, str(dtype), size_average, got, want)

    key = jax.random.PRNGKey(0)
    k1, k2, k3 = jax.random.split(key, 3)
    run_case(k1, 8, 32, jnp.float32)      # tile-aligned batch, single grid step
    run_case(k2, 50, 32, jnp.float32)     # ragged batch -> in-kernel row mask
    run_case(k3, 100, 200, jnp.bfloat16)  # bf16 inputs, 16-row sublane tiles

    print("KERNEL_OK")
</pallas_src>

<mosaic_0001>
module attributes {stable_mosaic.version = 11 : i64} {
  func.func @_triplet_loss_kernel(%arg0: i32, %arg1: memref<8x32xf32, #tpu.memory_space<vmem>>, %arg2: memref<8x32xf32, #tpu.memory_space<vmem>>, %arg3: memref<8x32xf32, #tpu.memory_space<vmem>>, %arg4: memref<8x128xf32, #tpu.memory_space<vmem>>) attributes {dimension_semantics = [#tpu.dimension_semantics<parallel>], iteration_bounds = array<i64: 1>, scalar_prefetch = 0 : i64, scratch_operands = 0 : i64, tpu.core_type = #tpu.core_type<tc>, window_params = [{transform_indices = @transform_0, window_bounds = array<i64: 8, 32>}, {transform_indices = @transform_1, window_bounds = array<i64: 8, 32>}, {transform_indices = @transform_2, window_bounds = array<i64: 8, 32>}, {transform_indices = @transform_3, window_bounds = array<i64: 8, 128>}]} {
    %c0 = arith.constant 0 : index
    %c0_0 = arith.constant 0 : index
    %0 = vector.load %arg1[%c0, %c0_0] : memref<8x32xf32, #tpu.memory_space<vmem>>, vector<8x32xf32>
    %c0_1 = arith.constant 0 : index
    %c0_2 = arith.constant 0 : index
    %1 = vector.load %arg2[%c0_1, %c0_2] : memref<8x32xf32, #tpu.memory_space<vmem>>, vector<8x32xf32>
    %c0_3 = arith.constant 0 : index
    %c0_4 = arith.constant 0 : index
    %2 = vector.load %arg3[%c0_3, %c0_4] : memref<8x32xf32, #tpu.memory_space<vmem>>, vector<8x32xf32>
    %3 = arith.subf %2, %1 : vector<8x32xf32>
    %4 = arith.subf %0, %1 : vector<8x32xf32>
    %5 = arith.subf %0, %2 : vector<8x32xf32>
    %6 = arith.addf %4, %5 : vector<8x32xf32>
    %7 = arith.mulf %3, %6 : vector<8x32xf32>
    %cst = arith.constant dense<0.000000e+00> : vector<8xf32>
    %8 = vector.multi_reduction <add>, %7, %cst [1] : vector<8x32xf32> to vector<8xf32>
    %9 = vector.shape_cast %8 : vector<8xf32> to vector<8x1xf32>
    %cst_5 = arith.constant 1.000000e+00 : f32
    %10 = vector.broadcast %cst_5 : f32 to vector<8x1xf32>
    %11 = arith.addf %9, %10 : vector<8x1xf32>
    %cst_6 = arith.constant 0.000000e+00 : f32
    %12 = vector.broadcast %cst_6 : f32 to vector<8x1xf32>
    %13 = arith.maximumf %11, %12 : vector<8x1xf32>
    %14 = vector.shape_cast %13 : vector<8x1xf32> to vector<1x8x1xf32>
    %cst_7 = arith.constant dense<0.000000e+00> : vector<1xf32>
    %15 = vector.multi_reduction <add>, %14, %cst_7 [1, 2] : vector<1x8x1xf32> to vector<1xf32>
    %16 = vector.shape_cast %15 : vector<1xf32> to vector<1x1x1xf32>
    %17 = vector.extract %16[0, 0, 0] : f32 from vector<1x1x1xf32>
    %18 = tpu.iota {dimensions = array<i32: 0>} : vector<8x128xi32>
    %19 = tpu.iota {dimensions = array<i32: 1>} : vector<8x128xi32>
    %c0_i32 = arith.constant 0 : i32
    %20 = vector.broadcast %c0_i32 : i32 to vector<8x128xi32>
    %21 = arith.cmpi eq, %18, %20 : vector<8x128xi32>
    %c0_i32_8 = arith.constant 0 : i32
    %22 = vector.broadcast %c0_i32_8 : i32 to vector<8x128xi32>
    %23 = arith.cmpi eq, %19, %22 : vector<8x128xi32>
    %24 = arith.andi %21, %23 : vector<8x128xi1>
    %cst_9 = arith.constant 0.000000e+00 : f32
    %25 = vector.broadcast %17 : f32 to vector<8x128xf32>
    %26 = vector.broadcast %cst_9 : f32 to vector<8x128xf32>
    %27 = arith.select %24, %25, %26 : vector<8x128xi1>, vector<8x128xf32>
    %c0_10 = arith.constant 0 : index
    %c0_11 = arith.constant 0 : index
    %28 = vector.load %arg4[%c0_10, %c0_11] : memref<8x128xf32, #tpu.memory_space<vmem>>, vector<8x128xf32>
    tpu.vector_store %arg4[%c0_10, %c0_11], %27 {strides = array<i32>} : memref<8x128xf32, #tpu.memory_space<vmem>>, vector<8x128xf32>,
    return
  }
  func.func @transform_0(%arg0: i32) -> (i32, i32) {
    %c0_i32 = arith.constant 0 : i32
    %c0_i32_0 = arith.constant 0 : i32
    return %arg0, %c0_i32 : i32, i32
  }
  func.func @transform_1(%arg0: i32) -> (i32, i32) {
    %c0_i32 = arith.constant 0 : i32
    %c0_i32_0 = arith.constant 0 : i32
    return %arg0, %c0_i32 : i32, i32
  }
  func.func @transform_2(%arg0: i32) -> (i32, i32) {
    %c0_i32 = arith.constant 0 : i32
    %c0_i32_0 = arith.constant 0 : i32
    return %arg0, %c0_i32 : i32, i32
  }
  func.func @transform_3(%arg0: i32) -> (i32, i32) {
    %c0_i32 = arith.constant 0 : i32
    %c0_i32_0 = arith.constant 0 : i32
    return %c0_i32, %arg0 : i32, i32
  }
}

</mosaic_0001>

<llo_original>
// kernel: tpu_custom_call.1
$region0: #{tpu_custom_call.1}
  #allocation0 [shape = 'u32[]', space=smem, size = 0x4, offset = 0x4, fixed_abs, tag = 'smem constant byte address 0x4 - core index']
  #allocation1 [shape = 'u32[144,128]{1,0:T(1,128)}', space=vmem, size = 0x12000, scoped, tag = 'internal scratch']
  %s0 = inlined_call_operand.hbm [shape: f32[8,32], index: 0, kind: input, shape index: {}]
  %s1 = inlined_call_operand.hbm [shape: f32[8,32], index: 1, kind: input, shape index: {}]
  %s2 = inlined_call_operand.hbm [shape: f32[8,32], index: 2, kind: input, shape index: {}]
  %s3 = inlined_call_operand.hbm [shape: f32[8,128], index: 3, kind: output, shape index: {}]
  %s4 = sld [smem:[#allocation0]]
  $region34: #{tpu_custom_call.1} parent=0
    _
  %s6 = ssub.s32 1, %s4
  %s7 = scalar_select 0, %s6, %s4
  $region1: #{tpu_custom_call.1} parent=0
    #allocation2 [shape = 'u8[4096]{0}', space=vmem, size = 0x1000, scoped, tag = 'input window, operand 0, single buffered']
    #allocation3 [shape = 's32[1]{0}', space=sflag, size = 0x4, scoped, tag = 'scoped memory for tpu_custom_call.1']
    #allocation4 [shape = 's32[1]{0}', space=sflag, size = 0x4, scoped, tag = 'scoped memory for tpu_custom_call.1']
    #allocation5 [shape = 'u8[4096]{0}', space=vmem, size = 0x1000, scoped, tag = 'input window, operand 1, single buffered']
    #allocation6 [shape = 's32[1]{0}', space=sflag, size = 0x4, scoped, tag = 'scoped memory for tpu_custom_call.1']
    #allocation7 [shape = 'u8[4096]{0}', space=vmem, size = 0x1000, scoped, tag = 'input window, operand 2, single buffered']
    #allocation8 [shape = 'u8[4096]{0}', space=vmem, size = 0x1000, scoped, tag = 'output window, operand 0, single buffered']
    %8 = vsyncpa [#allocation3], 0
    %9 = vsyncpa [#allocation6], 0
    %10 = vsyncpa [#allocation4], 0
    // Predicated region
    $region2: #{tpu_custom_call.1} parent=1 // pred_check
      _
    $region3: #{tpu_custom_call.1} parent=1 // pred_check_branch
      %12 = sbr.rel (0) target = $region5
    $region4: #{tpu_custom_call.1} parent=1 // pred_region
      %s14 = ssub.s32 128, 128
      %15 = vsyncadd [#allocation3], %s14
      %s17 = sshll.u32 [#allocation2], 4
      %s18 = int_to_ptr.vmem [resolvable:$true] %s17
      %20 = dma.hbm_to_vmem [thread:$0]  %s0, 128, %s18, [#allocation3]
    $region5: #{tpu_custom_call.1} parent=1 // pred_fallthru
      _
    // Predicated region
    $region6: #{tpu_custom_call.1} parent=1 // pred_check
      _
    $region7: #{tpu_custom_call.1} parent=1 // pred_check_branch
      %22 = sbr.rel (0) target = $region9
    $region8: #{tpu_custom_call.1} parent=1 // pred_region
      %s24 = ssub.s32 128, 128
      %25 = vsyncadd [#allocation6], %s24
      %s27 = sshll.u32 [#allocation5], 4
      %s28 = int_to_ptr.vmem [resolvable:$true] %s27
      %30 = dma.hbm_to_vmem [thread:$0]  %s1, 128, %s28, [#allocation6]
    $region9: #{tpu_custom_call.1} parent=1 // pred_fallthru
      _
    // Predicated region
    $region10: #{tpu_custom_call.1} parent=1 // pred_check
      _
    $region11: #{tpu_custom_call.1} parent=1 // pred_check_branch
      %32 = sbr.rel (0) target = $region13
    $region12: #{tpu_custom_call.1} parent=1 // pred_region
      %s34 = ssub.s32 128, 128
      %35 = vsyncadd [#allocation6], %s34
      %s37 = sshll.u32 [#allocation7], 4
      %s38 = int_to_ptr.vmem [resolvable:$true] %s37
      %40 = dma.hbm_to_vmem [thread:$0]  %s2, 128, %s38, [#allocation6]
    $region13: #{tpu_custom_call.1} parent=1 // pred_fallthru
      _
    // Predicated region
    $region14: #{tpu_custom_call.1} parent=1 // pred_check
      _
    $region15: #{tpu_custom_call.1} parent=1 // pred_check_branch
      %42 = sbr.rel (0) target = $region17
    $region16: #{tpu_custom_call.1} parent=1 // pred_region
      %43 = dma.done [#allocation3], 128
    $region17: #{tpu_custom_call.1} parent=1 // pred_fallthru
      _
    // Predicated region
    $region18: #{tpu_custom_call.1} parent=1 // pred_check
      _
    $region19: #{tpu_custom_call.1} parent=1 // pred_check_branch
      %45 = sbr.rel (0) target = $region21
    $region20: #{tpu_custom_call.1} parent=1 // pred_region
      %46 = dma.done [#allocation6], 128
    $region21: #{tpu_custom_call.1} parent=1 // pred_fallthru
      _
    // Predicated region
    $region22: #{tpu_custom_call.1} parent=1 // pred_check
      _
    $region23: #{tpu_custom_call.1} parent=1 // pred_check_branch
      %48 = sbr.rel (0) target = $region25
    $region24: #{tpu_custom_call.1} parent=1 // pred_region
      %49 = dma.done [#allocation6], 128
    $region25: #{tpu_custom_call.1} parent=1 // pred_fallthru
      _
    %v50 = vld [vmem:[#allocation2] sm:$0xff]
    %v51 = vld [vmem:[#allocation5] sm:$0xff]
    %v52 = vld [vmem:[#allocation7] sm:$0xff]
    %v53 = vsub.f32 %v52, %v51
    %v54 = vsub.f32 %v50, %v51
    %v55 = vsub.f32 %v50, %v52
    %v56 = vadd.f32 %v54, %v55
    %v57 = vmul.f32 %v53, %v56
    %vm58 = vcmask 261120
    %v59 = vsel %vm58, %v57, 0.0
    %60 = vadd.xlane.f32.xlu0 %v59
    %v61 = vpop.xlane.xlu0 %60
    %v62 = vadd.f32 %v61, 1.0
    %v63 = vmax.f32 %v62, 0.0
    %vm64 = vcmask 7168
    %v65 = vsel %vm64, %v63, 0.0
    %66 = vadd.xlane.f32.xlu0 %v65
    %v67 = vpop.xlane.xlu0 %66
    %v68 = vrot.slane %v67, 4
    %v69 = vadd.f32 %v67, %v68
    %v70 = vrot.slane %v69, 2
    %v71 = vadd.f32 %v69, %v70
    %v72 = vrot.slane %v71, 1
    %v73 = vadd.f32 %v71, %v72
    %s74 = vtos %v73
    %v75 = vlaneseq
    %v76 = vshrl.u32 %v75, 7
    %v77 = vlaneseq
    %v78 = vand.u32 %v77, 127
    %vm79 = vcmp.eq.s32.totalorder %v76, 0
    %vm80 = vcmp.eq.s32.totalorder %v78, 0
    %vm81 = vmand %vm79, %vm80
    %v82 = vstv %s74
    %v83 = vsel %vm81, %v82, 0.0
    %84 = vst [vmem:[#allocation8] sm:$0xff] %v83
    // Predicated region
    $region26: #{tpu_custom_call.1} parent=1 // pred_check
      _
    $region27: #{tpu_custom_call.1} parent=1 // pred_check_branch
      %86 = sbr.rel (0) target = $region29
    $region28: #{tpu_custom_call.1} parent=1 // pred_region
      %s88 = ssub.s32 128, 128
      %89 = vsyncadd [#allocation4], %s88
      %s91 = sshll.u32 [#allocation8], 4
      %s92 = int_to_ptr.vmem [resolvable:$true] %s91
      %94 = dma.vmem_to_hbm [thread:$0]  %s92, 128, %s3, [#allocation4]
    $region29: #{tpu_custom_call.1} parent=1 // pred_fallthru
      _
    // Predicated region
    $region30: #{tpu_custom_call.1} parent=1 // pred_check
      _
    $region31: #{tpu_custom_call.1} parent=1 // pred_check_branch
      %96 = sbr.rel (0) target = $region33
    $region32: #{tpu_custom_call.1} parent=1 // pred_region
      %97 = dma.done [#allocation4], 128
    $region33: #{tpu_custom_call.1} parent=1 // pred_fallthru
      _
    %98 = vsyncpa [#allocation3], 1
    %99 = vsyncpa [#allocation6], 1
    %100 = vsyncpa [#allocation4], 1

</llo_original>
